<compile_context>
chip_gen: v5e
topology: v5e:2x2
jax: 0.10.0
libtpu: 0.0.40
codegen_flags: <defaults>
</compile_context>

<pallas_src>
import functools
import math

import jax
import jax.numpy as jnp
from jax.experimental import pallas as pl
from jax.experimental.pallas import tpu as pltpu

_EPS = 1e-12  # matches torch.nn.functional.normalize default


def _round_up(x, n):
    return ((x + n - 1) // n) * n


def _add_margin_kernel(x_ref, wt_ref, invx_ref, label_ref, out_ref, *, s, m, block_c):
    # Inverse L2 norm of each class column of this weight tile (f32, EUP rsqrt).
    w32 = wt_ref[...].astype(jnp.float32)                                   # (D, TC)
    inv_w = jax.lax.rsqrt(
        jnp.maximum(jnp.sum(w32 * w32, axis=0, keepdims=True),
                    jnp.float32(_EPS * _EPS)))                              # (1, TC)

    # Raw dot on the MXU: bf16 operands, f32 accumulation.
    raw = jnp.dot(x_ref[...].astype(jnp.bfloat16), wt_ref[...],
                  preferred_element_type=jnp.float32)                       # (TB, TC)

    # cosine = (x @ w.T) / (||x|| * ||w||): both normalizations folded post-dot.
    cosine = raw * invx_ref[...] * inv_w                                    # (TB, TC)

    # CosFace margin on the label class only (class-tile offset for tiled C).
    col = (jax.lax.broadcasted_iota(jnp.int32, cosine.shape, 1)
           + pl.program_id(1) * block_c)
    one_hot = col == label_ref[...]                                         # (TB,1) bcast
    out_ref[...] = jnp.where(one_hot, cosine - m, cosine) * s


def add_margin_product(x, weight, label, s=30.0, m=0.4, *,
                       block_b=128, block_c=512, vmem_limit_bytes=None):
    """CosFace / AddMarginProduct forward.

    x:      (B, in_features) float
    weight: (out_features, in_features) float (same layout as the torch module)
    label:  (B,) int
    returns (B, out_features) float32
    """
    B, D = x.shape
    C, D2 = weight.shape
    assert D == D2

    xf = x.astype(jnp.float32)
    wf = weight.astype(jnp.float32)

    # Hardware-aligned, lane-dense tiles.
    TB = min(_round_up(B, 8), block_b)      # sublane-aligned batch tile
    TC = min(_round_up(C, 128), block_c)    # lane-dense class tile
    Bp = _round_up(B, TB)
    Cp = _round_up(C, TC)
    Dp = _round_up(D, 128)                  # zero padding is exact for dot & norms

    xp = jnp.pad(xf, ((0, Bp - B), (0, Dp - D)))
    # Pre-transposed (D, C) bf16 weight stream: classes on the lane axis.
    wt = jnp.pad(wf, ((0, Cp - C), (0, Dp - D))).T.astype(jnp.bfloat16)     # (Dp, Cp)

    # Inverse row norms of x, computed once in exact f32 (B << C, negligible).
    inv_x = jax.lax.rsqrt(
        jnp.maximum(jnp.sum(xf * xf, axis=-1, keepdims=True),
                    jnp.float32(_EPS * _EPS)))
    inv_x = jnp.pad(inv_x, ((0, Bp - B), (0, 0)))

    labels = jnp.pad(label.astype(jnp.int32).reshape(B, 1),
                     ((0, Bp - B), (0, 0)), constant_values=-1)

    grid = (Bp // TB, Cp // TC)
    kernel = functools.partial(_add_margin_kernel,
                               s=float(s), m=float(m), block_c=TC)

    out = pl.pallas_call(
        kernel,
        out_shape=jax.ShapeDtypeStruct((Bp, Cp), jnp.float32),
        grid_spec=pltpu.PrefetchScalarGridSpec(
            num_scalar_prefetch=0,
            grid=grid,
            in_specs=[
                pl.BlockSpec((TB, Dp), lambda i, j: (i, 0)),   # x (resident per i)
                # Weight stream; bump to pipeline_mode=pl.Buffered(3) if the DMA
                # is still exposed at very small B (mem-bound regime).
                pl.BlockSpec((Dp, TC), lambda i, j: (0, j)),
                pl.BlockSpec((TB, 1), lambda i, j: (i, 0)),    # 1 / ||x||
                pl.BlockSpec((TB, 1), lambda i, j: (i, 0)),    # labels
            ],
            out_specs=pl.BlockSpec((TB, TC), lambda i, j: (i, j)),
        ),
        compiler_params=pltpu.CompilerParams(
            dimension_semantics=("parallel", "parallel"),
            vmem_limit_bytes=vmem_limit_bytes,   # raise on v6e / size tiles for 64MiB v7x
        ),
    )(xp, wt, inv_x, labels)

    return out[:B, :C]


def _reference(x, weight, label, s=30.0, m=0.4):
    """Pure f32 reference matching the PyTorch module."""
    xn = x / jnp.maximum(jnp.linalg.norm(x, axis=-1, keepdims=True), _EPS)
    wn = weight / jnp.maximum(jnp.linalg.norm(weight, axis=-1, keepdims=True), _EPS)
    cosine = jnp.matmul(xn, wn.T, precision=jax.lax.Precision.HIGHEST)
    one_hot = jax.nn.one_hot(label, weight.shape[0], dtype=cosine.dtype)
    return (one_hot * (cosine - m) + (1.0 - one_hot) * cosine) * s


def _reference_bf16(x, weight, label, s=30.0, m=0.4):
    """Reference applying the same bf16 operand rounding as the kernel."""
    xq = x.astype(jnp.bfloat16).astype(jnp.float32)
    wq = weight.astype(jnp.bfloat16).astype(jnp.float32)
    # Kernel folds 1/||x|| (exact f32 x) and 1/||w_bf16|| post-dot.
    xn = xq / jnp.maximum(jnp.linalg.norm(x, axis=-1, keepdims=True), _EPS)
    wn = wq / jnp.maximum(jnp.linalg.norm(wq, axis=-1, keepdims=True), _EPS)
    cosine = jnp.matmul(xn, wn.T, precision=jax.lax.Precision.HIGHEST)
    one_hot = jax.nn.one_hot(label, weight.shape[0], dtype=cosine.dtype)
    return (one_hot * (cosine - m) + (1.0 - one_hot) * cosine) * s


if __name__ == "__main__":
    key = jax.random.PRNGKey(0)
    k_x, k_w, k_l = jax.random.split(key, 3)

    B = 8              # batch
    in_features = 32
    out_features = 16
    s, m = 30.0, 0.4

    x = jax.random.normal(k_x, (B, in_features), dtype=jnp.float32)

    # Xavier-uniform init for weight (out_features, in_features), deterministic.
    bound = math.sqrt(6.0 / (in_features + out_features))
    weight = jax.random.uniform(
        k_w, (out_features, in_features), dtype=jnp.float32,
        minval=-bound, maxval=bound)

    label = jax.random.randint(k_l, (B,), 0, out_features, dtype=jnp.int32)

    out = add_margin_product(x, weight, label, s=s, m=m)
    out = jax.block_until_ready(out)
    assert out.shape == (B, out_features)

    # Tight check against a reference with the same bf16 operand quantization the
    # kernel uses (verifies normalization, margin, one-hot offset, scaling).
    ref_q = _reference_bf16(x, weight, label, s=s, m=m)
    assert jnp.allclose(out, ref_q, atol=5e-3, rtol=1e-3), (
        f"max abs err vs bf16-aware ref: {jnp.max(jnp.abs(out - ref_q))}")

    # Loose check against the pure-f32 reference: bf16 matmul operands bound the
    # cosine error at ~1e-2, i.e. ~s*1e-2 after scaling (2e-2*s for headroom).
    ref_f32 = _reference(x, weight, label, s=s, m=m)
    assert jnp.allclose(out, ref_f32, atol=2e-2 * s), (
        f"max abs err vs f32 ref: {jnp.max(jnp.abs(out - ref_f32))}")

    print("KERNEL_OK")
</pallas_src>

<mosaic_0001>
module attributes {stable_mosaic.version = 11 : i64} {
  func.func @_add_margin_kernel(%arg0: i32, %arg1: i32, %arg2: memref<8x128xf32, #tpu.memory_space<vmem>>, %arg3: memref<128x128xbf16, #tpu.memory_space<vmem>>, %arg4: memref<8x1xf32, #tpu.memory_space<vmem>>, %arg5: memref<8x1xi32, #tpu.memory_space<vmem>>, %arg6: memref<8x128xf32, #tpu.memory_space<vmem>>) attributes {dimension_semantics = [#tpu.dimension_semantics<parallel>, #tpu.dimension_semantics<parallel>], iteration_bounds = array<i64: 1, 1>, scalar_prefetch = 0 : i64, scratch_operands = 0 : i64, tpu.core_type = #tpu.core_type<tc>, window_params = [{transform_indices = @transform_0, window_bounds = array<i64: 8, 128>}, {transform_indices = @transform_1, window_bounds = array<i64: 128, 128>}, {transform_indices = @transform_2, window_bounds = array<i64: 8, 1>}, {transform_indices = @transform_3, window_bounds = array<i64: 8, 1>}, {transform_indices = @transform_4, window_bounds = array<i64: 8, 128>}]} {
    %c0 = arith.constant 0 : index
    %c0_0 = arith.constant 0 : index
    %0 = vector.load %arg3[%c0, %c0_0] : memref<128x128xbf16, #tpu.memory_space<vmem>>, vector<128x128xbf16>
    %1 = arith.extf %0 : vector<128x128xbf16> to vector<128x128xf32>
    %2 = arith.mulf %1, %1 : vector<128x128xf32>
    %cst = arith.constant dense<0.000000e+00> : vector<128xf32>
    %3 = vector.multi_reduction <add>, %2, %cst [0] : vector<128x128xf32> to vector<128xf32>
    %4 = vector.shape_cast %3 : vector<128xf32> to vector<1x128xf32>
    %cst_1 = arith.constant 1.000000e-24 : f32
    %5 = vector.broadcast %cst_1 : f32 to vector<1x128xf32>
    %6 = arith.maximumf %4, %5 : vector<1x128xf32>
    %7 = math.rsqrt %6 : vector<1x128xf32>
    %c0_2 = arith.constant 0 : index
    %c0_3 = arith.constant 0 : index
    %8 = vector.load %arg2[%c0_2, %c0_3] : memref<8x128xf32, #tpu.memory_space<vmem>>, vector<8x128xf32>
    %9 = arith.truncf %8 : vector<8x128xf32> to vector<8x128xbf16>
    %c0_4 = arith.constant 0 : index
    %c0_5 = arith.constant 0 : index
    %10 = vector.load %arg3[%c0_4, %c0_5] : memref<128x128xbf16, #tpu.memory_space<vmem>>, vector<128x128xbf16>
    %cst_6 = arith.constant dense<0.000000e+00> : vector<8x128xf32>
    %11 = tpu.matmul %9, %10, %cst_6 {dimension_numbers = #tpu.dot_dimension_numbers<[1], [0], [0], [1], [0, 0, 1, 1], [], []>} : vector<8x128xbf16>, vector<128x128xbf16>, vector<8x128xf32> -> vector<8x128xf32>
    %c0_7 = arith.constant 0 : index
    %c0_8 = arith.constant 0 : index
    %12 = vector.load %arg4[%c0_7, %c0_8] : memref<8x1xf32, #tpu.memory_space<vmem>>, vector<8x1xf32>
    %13 = vector.broadcast %12 : vector<8x1xf32> to vector<8x128xf32>
    %14 = arith.mulf %11, %13 : vector<8x128xf32>
    %15 = vector.broadcast %7 : vector<1x128xf32> to vector<8x128xf32>
    %16 = arith.mulf %14, %15 : vector<8x128xf32>
    %17 = tpu.iota {dimensions = array<i32: 1>} : vector<8x128xi32>
    %c128_i32 = arith.constant 128 : i32
    %18 = arith.muli %arg1, %c128_i32 : i32
    %19 = vector.broadcast %18 : i32 to vector<8x128xi32>
    %20 = arith.addi %17, %19 : vector<8x128xi32>
    %c0_9 = arith.constant 0 : index
    %c0_10 = arith.constant 0 : index
    %21 = vector.load %arg5[%c0_9, %c0_10] : memref<8x1xi32, #tpu.memory_space<vmem>>, vector<8x1xi32>
    %22 = vector.broadcast %21 : vector<8x1xi32> to vector<8x128xi32>
    %23 = arith.cmpi eq, %20, %22 : vector<8x128xi32>
    %cst_11 = arith.constant 4.000000e-01 : f32
    %24 = vector.broadcast %cst_11 : f32 to vector<8x128xf32>
    %25 = arith.subf %16, %24 : vector<8x128xf32>
    %26 = arith.select %23, %25, %16 : vector<8x128xi1>, vector<8x128xf32>
    %cst_12 = arith.constant 3.000000e+01 : f32
    %27 = vector.broadcast %cst_12 : f32 to vector<8x128xf32>
    %28 = arith.mulf %26, %27 : vector<8x128xf32>
    %c0_13 = arith.constant 0 : index
    %c0_14 = arith.constant 0 : index
    %29 = vector.load %arg6[%c0_13, %c0_14] : memref<8x128xf32, #tpu.memory_space<vmem>>, vector<8x128xf32>
    tpu.vector_store %arg6[%c0_13, %c0_14], %28 {strides = array<i32>} : memref<8x128xf32, #tpu.memory_space<vmem>>, vector<8x128xf32>,
    return
  }
  func.func @transform_0(%arg0: i32, %arg1: i32) -> (i32, i32) {
    %c0_i32 = arith.constant 0 : i32
    %c0_i32_0 = arith.constant 0 : i32
    return %arg0, %c0_i32 : i32, i32
  }
  func.func @transform_1(%arg0: i32, %arg1: i32) -> (i32, i32) {
    %c0_i32 = arith.constant 0 : i32
    %c0_i32_0 = arith.constant 0 : i32
    return %c0_i32, %arg1 : i32, i32
  }
  func.func @transform_2(%arg0: i32, %arg1: i32) -> (i32, i32) {
    %c0_i32 = arith.constant 0 : i32
    %c0_i32_0 = arith.constant 0 : i32
    return %arg0, %c0_i32 : i32, i32
  }
  func.func @transform_3(%arg0: i32, %arg1: i32) -> (i32, i32) {
    %c0_i32 = arith.constant 0 : i32
    %c0_i32_0 = arith.constant 0 : i32
    return %arg0, %c0_i32 : i32, i32
  }
  func.func @transform_4(%arg0: i32, %arg1: i32) -> (i32, i32) {
    %c0_i32 = arith.constant 0 : i32
    return %arg0, %arg1 : i32, i32
  }
}

</mosaic_0001>

<llo_original>
// kernel: tpu_custom_call.1
$region0: #{tpu_custom_call.1}
  #allocation0 [shape = 'u32[]', space=smem, size = 0x4, offset = 0x4, fixed_abs, tag = 'smem constant byte address 0x4 - core index']
  #allocation1 [shape = 'u32[72,128]{1,0:T(1,128)}', space=vmem, size = 0x9000, scoped, tag = 'internal scratch']
  %s0 = inlined_call_operand.vmem [shape: f32[8,128], index: 0, kind: input, shape index: {}]
  %s1 = inlined_call_operand.hbm [shape: bf16[128,128], index: 1, kind: input, shape index: {}]
  %s2 = inlined_call_operand.vmem [shape: f32[8,1], index: 2, kind: input, shape index: {}]
  %s3 = inlined_call_operand.vmem [shape: s32[8,1], index: 3, kind: input, shape index: {}]
  %s4 = inlined_call_operand.hbm [shape: f32[8,128], index: 4, kind: output, shape index: {}]
  %s5 = sld [smem:[#allocation0]]
  $region30: #{tpu_custom_call.1} parent=0
    _
  %s7 = ssub.s32 1, %s5
  %s8 = scalar_select 0, %s7, %s5
  $region1: #{tpu_custom_call.1} parent=0
    #allocation2 [shape = 'u8[32768]{0}', space=vmem, size = 0x8000, scoped, tag = 'input window, operand 1, single buffered']
    #allocation3 [shape = 's32[1]{0}', space=sflag, size = 0x4, scoped, tag = 'scoped memory for tpu_custom_call.1']
    #allocation4 [shape = 's32[1]{0}', space=sflag, size = 0x4, scoped, tag = 'scoped memory for tpu_custom_call.1']
    #allocation5 [shape = 'u8[4096]{0}', space=vmem, size = 0x1000, scoped, tag = 'output window, operand 0, single buffered']
    %9 = vsyncpa [#allocation3], 0
    %10 = vsyncpa [#allocation4], 0
    // Predicated region
    $region2: #{tpu_custom_call.1} parent=1 // pred_check
      _
    $region3: #{tpu_custom_call.1} parent=1 // pred_check_branch
      %12 = sbr.rel (0) target = $region5
    $region4: #{tpu_custom_call.1} parent=1 // pred_region
      _
    $region5: #{tpu_custom_call.1} parent=1 // pred_fallthru
      _
    // Predicated region
    $region6: #{tpu_custom_call.1} parent=1 // pred_check
      _
    $region7: #{tpu_custom_call.1} parent=1 // pred_check_branch
      %14 = sbr.rel (0) target = $region9
    $region8: #{tpu_custom_call.1} parent=1 // pred_region
      %16 = vsyncadd [#allocation3], 0
      %s17 = sshll.u32 %s1, 4
      %s18 = int_to_ptr.hbm [resolvable:$true] %s17
      %s19 = sshll.u32 [#allocation2], 4
      %s20 = int_to_ptr.vmem [resolvable:$true] %s19
      %25 = dma.hbm_to_vmem [thread:$0]  %s18, 1024, %s20, [#allocation3], 64, 64, 4
    $region9: #{tpu_custom_call.1} parent=1 // pred_fallthru
      _
    // Predicated region
    $region10: #{tpu_custom_call.1} parent=1 // pred_check
      _
    $region11: #{tpu_custom_call.1} parent=1 // pred_check_branch
      %27 = sbr.rel (0) target = $region13
    $region12: #{tpu_custom_call.1} parent=1 // pred_region
      _
    $region13: #{tpu_custom_call.1} parent=1 // pred_fallthru
      _
    // Predicated region
    $region14: #{tpu_custom_call.1} parent=1 // pred_check
      _
    $region15: #{tpu_custom_call.1} parent=1 // pred_check_branch
      %29 = sbr.rel (0) target = $region17
    $region16: #{tpu_custom_call.1} parent=1 // pred_region
      _
    $region17: #{tpu_custom_call.1} parent=1 // pred_fallthru
      _
    // Predicated region
    $region18: #{tpu_custom_call.1} parent=1 // pred_check
      _
    $region19: #{tpu_custom_call.1} parent=1 // pred_check_branch
      %31 = sbr.rel (0) target = $region21
    $region20: #{tpu_custom_call.1} parent=1 // pred_region
      %33 = dma.done [#allocation3], 1024
    $region21: #{tpu_custom_call.1} parent=1 // pred_fallthru
      _
    %v34 = vld [vmem:[#allocation2] sm:$0xf]
    %v35 = vld [vmem:[#allocation2 + $0x4] sm:$0xf]
    %v36 = vld [vmem:[#allocation2 + $0x8] sm:$0xf]
    %v37 = vld [vmem:[#allocation2 + $0xc] sm:$0xf]
    %v38 = vld [vmem:[#allocation2 + $0x10] sm:$0xf]
    %v39 = vld [vmem:[#allocation2 + $0x14] sm:$0xf]
    %v40 = vld [vmem:[#allocation2 + $0x18] sm:$0xf]
    %v41 = vld [vmem:[#allocation2 + $0x1c] sm:$0xf]
    %v42 = vld [vmem:[#allocation2 + $0x20] sm:$0xf]
    %v43 = vld [vmem:[#allocation2 + $0x24] sm:$0xf]
    %v44 = vld [vmem:[#allocation2 + $0x28] sm:$0xf]
    %v45 = vld [vmem:[#allocation2 + $0x2c] sm:$0xf]
    %v46 = vld [vmem:[#allocation2 + $0x30] sm:$0xf]
    %v47 = vld [vmem:[#allocation2 + $0x34] sm:$0xf]
    %v48 = vld [vmem:[#allocation2 + $0x38] sm:$0xf]
    %v49 = vld [vmem:[#allocation2 + $0x3c] sm:$0xf]
    %v50 = vunpack.c.l.bf16 %v34
    %v51 = vunpack.c.l.bf16 %v35
    %v52 = vunpack.c.l.bf16 %v36
    %v53 = vunpack.c.l.bf16 %v37
    %v54 = vunpack.c.l.bf16 %v38
    %v55 = vunpack.c.l.bf16 %v39
    %v56 = vunpack.c.l.bf16 %v40
    %v57 = vunpack.c.l.bf16 %v41
    %v58 = vunpack.c.l.bf16 %v42
    %v59 = vunpack.c.l.bf16 %v43
    %v60 = vunpack.c.l.bf16 %v44
    %v61 = vunpack.c.l.bf16 %v45
    %v62 = vunpack.c.l.bf16 %v46
    %v63 = vunpack.c.l.bf16 %v47
    %v64 = vunpack.c.l.bf16 %v48
    %v65 = vunpack.c.l.bf16 %v49
    %v66 = vmul.f32 %v50, %v50
    %v67 = vmul.f32 %v51, %v51
    %v68 = vmul.f32 %v52, %v52
    %v69 = vmul.f32 %v53, %v53
    %v70 = vmul.f32 %v54, %v54
    %v71 = vmul.f32 %v55, %v55
    %v72 = vmul.f32 %v56, %v56
    %v73 = vmul.f32 %v57, %v57
    %v74 = vmul.f32 %v58, %v58
    %v75 = vmul.f32 %v59, %v59
    %v76 = vmul.f32 %v60, %v60
    %v77 = vmul.f32 %v61, %v61
    %v78 = vmul.f32 %v62, %v62
    %v79 = vmul.f32 %v63, %v63
    %v80 = vmul.f32 %v64, %v64
    %v81 = vmul.f32 %v65, %v65
    %v82 = vadd.f32 %v66, %v67
    %v83 = vadd.f32 %v82, %v68
    %v84 = vadd.f32 %v83, %v69
    %v85 = vadd.f32 %v84, %v70
    %v86 = vadd.f32 %v85, %v71
    %v87 = vadd.f32 %v86, %v72
    %v88 = vadd.f32 %v87, %v73
    %v89 = vadd.f32 %v88, %v74
    %v90 = vadd.f32 %v89, %v75
    %v91 = vadd.f32 %v90, %v76
    %v92 = vadd.f32 %v91, %v77
    %v93 = vadd.f32 %v92, %v78
    %v94 = vadd.f32 %v93, %v79
    %v95 = vadd.f32 %v94, %v80
    %v96 = vadd.f32 %v95, %v81
    %v97 = vrot.slane %v96, 4
    %v98 = vadd.f32 %v96, %v97
    %v99 = vrot.slane %v98, 2
    %v100 = vadd.f32 %v98, %v99
    %v101 = vrot.slane %v100, 1
    %v102 = vadd.f32 %v100, %v101
    %v103 = vmax.f32 %v102, 1e-24
    %v104 = vrsqrt.pop %v103
    %v105 = vmul.f32 %v104, %v103
    %v106 = vmul.f32 %v105, %v104
    %v107 = vmul.f32 0.5, %v106
    %v108 = vsub.f32 1.5, %v107
    %v109 = vmul.f32 %v104, %v108
    %vm110 = vweird.f32 %v103
    %vm111 = vweird.f32 %v104
    %vm112 = vmor %vm110, %vm111
    %v113 = vsel %vm112, %v104, %v109
    %v114 = vld [vmem:[%s0] sm:$0xff]
    %v115 = vpack.c.bf16 %v114, %v114
    %v132 = vunpack.c.l.b16 %v34
    %v133 = vunpack.c.l.b16 %v35
    %v134 = vunpack.c.l.b16 %v36
    %v135 = vunpack.c.l.b16 %v37
    %v136 = vunpack.c.l.b16 %v38
    %v137 = vunpack.c.l.b16 %v39
    %v138 = vunpack.c.l.b16 %v40
    %v139 = vunpack.c.l.b16 %v41
    %v140 = vunpack.c.l.b16 %v42
    %v141 = vunpack.c.l.b16 %v43
    %v142 = vunpack.c.l.b16 %v44
    %v143 = vunpack.c.l.b16 %v45
    %v144 = vunpack.c.l.b16 %v46
    %v145 = vunpack.c.l.b16 %v47
    %v146 = vunpack.c.l.b16 %v48
    %v147 = vunpack.c.l.b16 %v49
    %v148 = vpack.c.b16 %v133, %v132
    %v149 = vpack.c.b16 %v135, %v134
    %v150 = vpack.c.b16 %v137, %v136
    %v151 = vpack.c.b16 %v139, %v138
    %v152 = vpack.c.b16 %v141, %v140
    %v153 = vpack.c.b16 %v143, %v142
    %v154 = vpack.c.b16 %v145, %v144
    %v155 = vpack.c.b16 %v147, %v146
    %164 = vmatpush.bf16.msra.mxu0 %v155
    %165 = vmatpush.bf16.msra.mxu0 %v154
    %166 = vmatpush.bf16.msra.mxu0 %v153
    %167 = vmatpush.bf16.msra.mxu0 %v152
    %168 = vmatpush.bf16.msra.mxu0 %v151
    %169 = vmatpush.bf16.msra.mxu0 %v150
    %170 = vmatpush.bf16.msra.mxu0 %v149
    %171 = vmatpush.bf16.msra.mxu0 %v148
    %172 = vmatmul.bf16.gmra.mxu0 %v115
    %v173 = vpop.f32.mrf.mxu0
    %v174 = vadd.f32 0.0, %v173
    %v175 = vpop.f32.mrf.mxu0
    %176 = vdwg.mxu0
    %v177 = vld [vmem:[%s2] sm:$0xff]
    %179 = vset.pattern.permute.xlu0 0
    %180 = vperm.xlu0 %179, %v177
    %v181 = vpop.permute.xlu0 %180
    %v183 = vmul.f32 %v174, %v181
    %v184 = vmul.f32 %v183, %v113
    %v185 = vlaneseq
    %v186 = vand.u32 %v185, 127
    %s187 = smul.u32 0, 128
    %v188 = vstv %s187
    %v189 = vadd.s32 %v186, %v188
    %v190 = vld [vmem:[%s3] sm:$0xff]
    %191 = vset.pattern.permute.xlu0 0
    %192 = vperm.xlu0 %191, %v190
    %v193 = vpop.permute.xlu0 %192
    %vm194 = vcmp.eq.s32.totalorder %v189, %v193
    %v195 = vsub.f32 %v184, 0.4
    %v196 = vsel %vm194, %v195, %v184
    %v197 = vmul.f32 %v196, 30.0
    %198 = vst [vmem:[#allocation5] sm:$0xff] %v197
    // Predicated region
    $region22: #{tpu_custom_call.1} parent=1 // pred_check
      _
    $region23: #{tpu_custom_call.1} parent=1 // pred_check_branch
      %200 = sbr.rel (0) target = $region25
    $region24: #{tpu_custom_call.1} parent=1 // pred_region
      %202 = vsyncadd [#allocation4], 0
      %s204 = sshll.u32 [#allocation5], 4
      %s205 = int_to_ptr.vmem [resolvable:$true] %s204
      %s206 = sshll.u32 %s4, 4
      %s207 = int_to_ptr.hbm [resolvable:$true] %s206
      %209 = dma.vmem_to_hbm [thread:$0]  %s205, 128, %s207, [#allocation4]
    $region25: #{tpu_custom_call.1} parent=1 // pred_fallthru
      _
    // Predicated region
    $region26: #{tpu_custom_call.1} parent=1 // pred_check
      _
    $region27: #{tpu_custom_call.1} parent=1 // pred_check_branch
      %211 = sbr.rel (0) target = $region29
    $region28: #{tpu_custom_call.1} parent=1 // pred_region
      %213 = dma.done [#allocation4], 128
    $region29: #{tpu_custom_call.1} parent=1 // pred_fallthru
      _
    %214 = vsyncpa [#allocation3], 1
    %215 = vsyncpa [#allocation4], 1

</llo_original>
